<compile_context>
chip_gen: v5e
topology: v5e:2x2
jax: 0.10.0
libtpu: 0.0.40
codegen_flags: <defaults>
</compile_context>

<pallas_src>
import functools

import jax
import jax.numpy as jnp
from jax.experimental import pallas as pl
from jax.experimental.pallas import tpu as pltpu


# ----------------------------------------------------------------------------
# pltpu.roll direction self-check (one tiny one-time kernel).
# ----------------------------------------------------------------------------
def _roll_probe_kernel(x_ref, o_ref):
    o_ref[...] = pltpu.roll(x_ref[...], 1, 0)


@functools.cache
def _roll_shift_sign():
    """Returns -1 if pltpu.roll matches jnp.roll (out[i] = in[(i - shift) % n]),
    +1 if it shifts the other way.  Probed once so the grouped-roll coefficient
    pairing in the main kernel can never be silently mis-signed."""
    x = jax.lax.broadcasted_iota(jnp.float32, (8, 128), 0)
    y = pl.pallas_call(
        _roll_probe_kernel,
        out_shape=jax.ShapeDtypeStruct((8, 128), jnp.float32),
    )(x)
    return -1 if int(y[0, 0]) == 7 else 1


# ----------------------------------------------------------------------------
# Pallas kernel
# ----------------------------------------------------------------------------
def _make_trainer_kernel(C, R_blk, roll_sign):
    """One grid step processes R_blk = B_blk*C rows of the (B*C, H*W) layout.

    coef_ref  : (R_blk, 2C+2) f32 VMEM, per-row coefficient columns:
                col 0 = sqrt(alphas_bar)[t_b]
                col 1 = sqrt(1 - alphas_bar)[t_b]
                col 2 = model bias for (sample b, channel c)
                col 3+(C-1)+o = w[c, c+o]  (0 where c+o falls outside 0..C-1)
    x0_ref, noise_ref : (R_blk, HW) VMEM tiles, row r = b*C + c
    loss_ref  : (R_blk, HW) f32 VMEM tile -- element-wise MSE (reduction='none')
    """
    mix0 = 3 + (C - 1)  # column of the o = 0 (diagonal) mix coefficient

    def kernel(coef_ref, x0_ref, noise_ref, loss_ref):
        # Upcast per tile so bf16 inputs work (halves HBM traffic on v6e/v7x);
        # a no-op for f32 inputs.
        x0 = x0_ref[...].astype(jnp.float32)
        nz = noise_ref[...].astype(jnp.float32)

        sa = coef_ref[:, 0:1]        # (R_blk, 1) column -> lane broadcast
        sb = coef_ref[:, 1:2]
        bias = coef_ref[:, 2:3]

        # q_sample: x_t = sa*x0 + sb*noise as one full-tile FMA (dense vregs).
        x_t = sa * x0 + sb * nz

        # Synthetic model (1x1 conv over channels + per-sample bias) as grouped
        # roll-FMAs: pred[r] = bias[r] + sum_o w[c, c+o] * x_t[r+o].  Rows whose
        # source would cross a sample boundary carry an exactly-zero coefficient,
        # so the roll wrap-around never contaminates the result.
        pred = bias + coef_ref[:, mix0:mix0 + 1] * x_t
        for o in range(1, C):
            s_fwd = (roll_sign * o) % R_blk        # operand row r + o
            s_bwd = (-roll_sign * o) % R_blk       # operand row r - o
            pred = pred + coef_ref[:, mix0 + o:mix0 + o + 1] * pltpu.roll(x_t, s_fwd, 0)
            pred = pred + coef_ref[:, mix0 - o:mix0 - o + 1] * pltpu.roll(x_t, s_bwd, 0)

        # F.mse_loss(pred, noise, reduction='none'); single dense full-tile store.
        diff = pred - nz
        loss_ref[...] = (diff * diff).astype(loss_ref.dtype)

    return kernel


def _choose_batch_block(B, C, HW, itemsize=4, *,
                        target_bytes=1 << 20, min_grid=2, min_bytes=256 << 10):
    """Samples per grid step.

    * (B_blk*C) rows must be a multiple of 8 (full sublanes) unless the block
      covers the whole array.
    * per-stream tile <= ~1 MiB keeps 3 streams x 2 default pipeline buffers
      plus in-kernel temporaries well inside v5e's 16 MiB scoped-VMEM default
      (v6e/v7x scoped defaults are 32 MiB) while amortizing the ~0.35 us/step
      pipeline overhead.
    * Never fall back to an over-budget whole-array block when an aligned
      divisor exists.
    * Prefer leaving >= `min_grid` grid steps (when the smaller block is still
      reasonably sized) so dimension_semantics=("parallel",) can shard the grid
      across v7x's two TensorCores.
    """
    per_sample = C * HW * itemsize
    divs = [d for d in range(1, B + 1) if B % d == 0]
    aligned = [d for d in divs if (d * C) % 8 == 0] or [B]
    under = [d for d in aligned if d * per_sample <= target_bytes]
    if not under:
        # Even the smallest aligned block busts the target; take the smallest
        # (never the whole array) -- vmem_limit_bytes below gives headroom.
        # TODO(synk): for very large H*W a second grid axis over the spatial dim
        # would bound the tile further; not needed at these shapes.
        return min(aligned)
    best = max(under)
    if B // best < min_grid:
        smaller = [d for d in under if B // d >= min_grid and d * per_sample >= min_bytes]
        if smaller:
            best = max(smaller)
    return best


def _build_row_coefficients(sa_t, sb_t, bias, w, B, C):
    """Per-row coefficient columns (B*C, 2C+2) f32:
    [sa, sb, bias, w[c, c-(C-1)], ..., w[c, c], ..., w[c, c+(C-1)]]
    with out-of-range mix entries set to 0.  Tiny side input -> no SMEM padding
    blow-up and no per-row scalar loops inside the kernel."""
    R = B * C
    c_idx = jnp.arange(R, dtype=jnp.int32) % C
    offs = jnp.arange(-(C - 1), C, dtype=jnp.int32)
    src = c_idx[:, None] + offs[None, :]
    valid = (src >= 0) & (src < C)
    mix = jnp.where(valid, w[c_idx[:, None], jnp.clip(src, 0, C - 1)], 0.0)
    cols = [jnp.repeat(sa_t, C)[:, None],
            jnp.repeat(sb_t, C)[:, None],
            bias.reshape(R)[:, None],
            mix]
    return jnp.concatenate(cols, axis=1).astype(jnp.float32)


def trainer_pallas_call(coef, x0_rows, noise_rows, *, B_blk, C, HW):
    R = x0_rows.shape[0]                 # B * C
    R_blk = B_blk * C
    ncol = coef.shape[1]
    grid = (R // R_blk,)
    kernel = _make_trainer_kernel(C, R_blk, _roll_shift_sign())
    return pl.pallas_call(
        kernel,
        out_shape=jax.ShapeDtypeStruct((R, HW), jnp.float32),
        grid=grid,
        in_specs=[
            pl.BlockSpec((R_blk, ncol), lambda g: (g, 0)),   # per-row coefficients
            pl.BlockSpec((R_blk, HW), lambda g: (g, 0)),     # x0 rows
            pl.BlockSpec((R_blk, HW), lambda g: (g, 0)),     # noise rows
        ],
        out_specs=pl.BlockSpec((R_blk, HW), lambda g: (g, 0)),
        compiler_params=pltpu.CompilerParams(
            dimension_semantics=("parallel",),       # megacore / v7x 2-TC sharding
            vmem_limit_bytes=32 << 20,               # headroom on v5e, <= v7x physical
        ),
    )(coef, x0_rows, noise_rows)


# ----------------------------------------------------------------------------
# GaussianDiffusionTrainer (JAX wrapper)
# ----------------------------------------------------------------------------
class GaussianDiffusionTrainer:
    def __init__(self, beta_1, beta_T, T, channels, num_labels1, num_labels2, key):
        self.T = T
        betas = jnp.linspace(beta_1, beta_T, T, dtype=jnp.float32)
        alphas = 1.0 - betas
        alphas_bar = jnp.cumprod(alphas, axis=0)
        self.betas = betas
        self.sqrt_alphas_bar = jnp.sqrt(alphas_bar)
        self.sqrt_one_minus_alphas_bar = jnp.sqrt(1.0 - alphas_bar)

        # Deterministic synthetic "model" parameters (the PyTorch spec wraps an
        # arbitrary external `model`; here: 1x1 conv + time/label embeddings).
        k_w, k_b, k_t, k_l1, k_l2 = jax.random.split(key, 5)
        self.w = jax.random.normal(k_w, (channels, channels), jnp.float32) * 0.1
        self.bias = jax.random.normal(k_b, (channels,), jnp.float32) * 0.01
        self.time_emb = jax.random.normal(k_t, (T, channels), jnp.float32) * 0.01
        self.label1_emb = jax.random.normal(k_l1, (num_labels1, channels), jnp.float32) * 0.01
        self.label2_emb = jax.random.normal(k_l2, (num_labels2, channels), jnp.float32) * 0.01

    def forward(self, x_0, label1, label2, key, return_aux=False):
        B, C, H, W = x_0.shape
        HW = H * W
        key_t, key_n = jax.random.split(key)

        # t = torch.randint(T, size=(B,));  noise = torch.randn_like(x_0)
        t = jax.random.randint(key_t, (B,), 0, self.T)
        noise = jax.random.normal(key_n, x_0.shape, dtype=x_0.dtype)
        # TODO(synk): generating noise in-kernel (pltpu.prng_seed/prng_random_bits)
        # would remove one full HBM input stream, but changes the RNG stream vs
        # jax.random and the trainer still needs to expose `noise`; kept explicit.

        # extract(v, t, x_shape) -> per-sample scalar gathers
        sa_t = self.sqrt_alphas_bar[t].astype(jnp.float32)              # (B,)
        sb_t = self.sqrt_one_minus_alphas_bar[t].astype(jnp.float32)    # (B,)

        # per-sample bias for the synthetic model (time + optional label embs)
        bias = self.bias[None, :] + self.time_emb[t]                    # (B, C)
        if label1 is not None:
            bias = bias + self.label1_emb[label1]
            if label2 is not None:
                bias = bias + self.label2_emb[label2]

        # Fold all per-row scalars into one tiny coefficient side input.
        coef = _build_row_coefficients(sa_t, sb_t, bias, self.w, B, C)

        # Flatten to (B*C, HW): spatial axis on lanes, batch*channel on sublanes.
        x0_rows = x_0.reshape(B * C, HW)
        noise_rows = noise.reshape(B * C, HW)

        B_blk = _choose_batch_block(B, C, HW, x_0.dtype.itemsize)
        loss_rows = trainer_pallas_call(coef, x0_rows, noise_rows,
                                        B_blk=B_blk, C=C, HW=HW)
        loss = loss_rows.reshape(B, C, H, W)

        if return_aux:
            return loss, {"t": t, "noise": noise, "bias": bias}
        return loss


# ----------------------------------------------------------------------------
if __name__ == "__main__":
    B, C, H, W = 2, 4, 16, 16
    T = 100
    beta_1, beta_T = 1e-4, 0.02

    key = jax.random.PRNGKey(0)
    k_param, k_x, k_fwd = jax.random.split(key, 3)

    trainer = GaussianDiffusionTrainer(beta_1, beta_T, T,
                                       channels=C, num_labels1=10,
                                       num_labels2=10, key=k_param)

    x_0 = jax.random.normal(k_x, (B, C, H, W), jnp.float32)
    label1 = jnp.array([1, 3], dtype=jnp.int32)
    label2 = jnp.array([2, 7], dtype=jnp.int32)

    loss, aux = trainer.forward(x_0, label1, label2, k_fwd, return_aux=True)
    loss = jax.block_until_ready(loss)
    assert loss.shape == (B, C, H, W)

    # One-time pure-JAX reference (elementwise f32 ops only, so no MXU-precision
    # ambiguity), kept OUT of the forward hot path.
    t, noise, bias = aux["t"], aux["noise"], aux["bias"]
    sa = trainer.sqrt_alphas_bar[t][:, None, None, None]
    sb = trainer.sqrt_one_minus_alphas_bar[t][:, None, None, None]
    x_t_ref = sa * x_0 + sb * noise
    pred_ref = (trainer.w[None, :, :, None, None]
                * x_t_ref[:, None, :, :, :]).sum(axis=2) + bias[:, :, None, None]
    loss_ref = (pred_ref - noise) ** 2
    assert jnp.allclose(loss, loss_ref, atol=1e-5, rtol=1e-5), "mismatch vs reference"
    print("KERNEL_OK")
</pallas_src>

<mosaic_0001>
module attributes {stable_mosaic.version = 11 : i64} {
  func.func @_roll_probe_kernel(%arg0: memref<8x128xf32, #tpu.memory_space<vmem>>, %arg1: memref<8x128xf32, #tpu.memory_space<vmem>>) attributes {dimension_semantics = [], scalar_prefetch = 0 : i64, scratch_operands = 0 : i64, tpu.core_type = #tpu.core_type<tc>} {
    %c0 = arith.constant 0 : index
    %c0_0 = arith.constant 0 : index
    %0 = vector.load %arg0[%c0, %c0_0] : memref<8x128xf32, #tpu.memory_space<vmem>>, vector<8x128xf32>
    %c1_i32 = arith.constant 1 : i32
    %1 = tpu.dynamic_rotate %0 by %c1_i32 dim 0 : vector<8x128xf32>, i32 -> vector<8x128xf32>
    %c0_1 = arith.constant 0 : index
    %c0_2 = arith.constant 0 : index
    %2 = vector.load %arg1[%c0_1, %c0_2] : memref<8x128xf32, #tpu.memory_space<vmem>>, vector<8x128xf32>
    tpu.vector_store %arg1[%c0_1, %c0_2], %1 {strides = array<i32>} : memref<8x128xf32, #tpu.memory_space<vmem>>, vector<8x128xf32>,
    return
  }
}

</mosaic_0001>

<llo_original>
// kernel: tpu_custom_call.1
$region0: #{tpu_custom_call.1}
  #allocation0 [shape = 'u32[]', space=smem, size = 0x4, offset = 0x4, fixed_abs, tag = 'smem constant byte address 0x4 - core index']
  #allocation1 [shape = 'u32[72,128]{1,0:T(1,128)}', space=vmem, size = 0x9000, scoped, tag = 'internal scratch']
  %s0 = inlined_call_operand.hbm [shape: f32[8,128], index: 0, kind: input, shape index: {}]
  %s1 = inlined_call_operand.hbm [shape: f32[8,128], index: 1, kind: output, shape index: {}]
  %s2 = sld [smem:[#allocation0]]
  $region18: #{tpu_custom_call.1} parent=0
    _
  %s4 = ssub.s32 1, %s2
  %s5 = scalar_select 0, %s4, %s2
  $region1: #{tpu_custom_call.1} parent=0
    #allocation2 [shape = 'u8[4096]{0}', space=vmem, size = 0x1000, scoped, tag = 'input window, operand 0, single buffered']
    #allocation3 [shape = 's32[1]{0}', space=sflag, size = 0x4, scoped, tag = 'scoped memory for tpu_custom_call.1']
    #allocation4 [shape = 's32[1]{0}', space=sflag, size = 0x4, scoped, tag = 'scoped memory for tpu_custom_call.1']
    #allocation5 [shape = 'u8[4096]{0}', space=vmem, size = 0x1000, scoped, tag = 'output window, operand 0, single buffered']
    %6 = vsyncpa [#allocation3], 0
    %7 = vsyncpa [#allocation4], 0
    // Predicated region
    $region2: #{tpu_custom_call.1} parent=1 // pred_check
      _
    $region3: #{tpu_custom_call.1} parent=1 // pred_check_branch
      %9 = sbr.rel (0) target = $region5
    $region4: #{tpu_custom_call.1} parent=1 // pred_region
      %11 = vsyncadd [#allocation3], 0
      %s13 = sshll.u32 %s0, 4
      %s14 = int_to_ptr.hbm [resolvable:$true] %s13
      %s15 = sshll.u32 [#allocation2], 4
      %s16 = int_to_ptr.vmem [resolvable:$true] %s15
      %18 = dma.hbm_to_vmem [thread:$0]  %s14, 128, %s16, [#allocation3]
    $region5: #{tpu_custom_call.1} parent=1 // pred_fallthru
      _
    // Predicated region
    $region6: #{tpu_custom_call.1} parent=1 // pred_check
      _
    $region7: #{tpu_custom_call.1} parent=1 // pred_check_branch
      %20 = sbr.rel (0) target = $region9
    $region8: #{tpu_custom_call.1} parent=1 // pred_region
      %22 = dma.done [#allocation3], 128
    $region9: #{tpu_custom_call.1} parent=1 // pred_fallthru
      _
    %v23 = vld [vmem:[#allocation2] sm:$0xff]
    %v24 = vrot.slane %v23, 7
    %25 = vst [vmem:[#allocation5] sm:$0xff] %v24
    // Predicated region
    $region10: #{tpu_custom_call.1} parent=1 // pred_check
      _
    $region11: #{tpu_custom_call.1} parent=1 // pred_check_branch
      %27 = sbr.rel (0) target = $region13
    $region12: #{tpu_custom_call.1} parent=1 // pred_region
      %29 = vsyncadd [#allocation4], 0
      %s31 = sshll.u32 [#allocation5], 4
      %s32 = int_to_ptr.vmem [resolvable:$true] %s31
      %s33 = sshll.u32 %s1, 4
      %s34 = int_to_ptr.hbm [resolvable:$true] %s33
      %36 = dma.vmem_to_hbm [thread:$0]  %s32, 128, %s34, [#allocation4]
    $region13: #{tpu_custom_call.1} parent=1 // pred_fallthru
      _
    // Predicated region
    $region14: #{tpu_custom_call.1} parent=1 // pred_check
      _
    $region15: #{tpu_custom_call.1} parent=1 // pred_check_branch
      %38 = sbr.rel (0) target = $region17
    $region16: #{tpu_custom_call.1} parent=1 // pred_region
      %40 = dma.done [#allocation4], 128
    $region17: #{tpu_custom_call.1} parent=1 // pred_fallthru
      _
    %41 = vsyncpa [#allocation3], 1
    %42 = vsyncpa [#allocation4], 1

</llo_original>
